<compile_context>
chip_gen: v5e
topology: v5e:2x2
jax: 0.10.0
libtpu: 0.0.40
codegen_flags: <defaults>
</compile_context>

<pallas_src>
import functools

import jax
import jax.numpy as jnp
from jax.experimental import pallas as pl
from jax.experimental.pallas import tpu as pltpu

_LANE = 128
_VMEM_LIMIT = 32 * 1024 * 1024   # explicit scoped-VMEM budget (safe on v5e/v6e/v7x)
_EPS = 1e-5                      # PyTorch BatchNorm2d default


def _round_up(n, m):
    return ((n + m - 1) // m) * m


def _row_tile(rows, cap=512):
    """Largest multiple-of-8 divisor of `rows` <= cap; prefer >=2 grid steps."""
    def pick(r, c):
        t = min(c, r)
        t -= t % 8
        while t >= 8:
            if r % t == 0:
                return t
            t -= 8
        return r
    t = pick(rows, cap)
    if t == rows and rows >= 16:
        t = pick(rows, max(8, rows // 2))
    return t


# ---------------------------------------------------------------------------
# Kernel 1a: 1x1 conv (matmul over flattened N*H*W rows) + BN statistics.
# Grid: (rows // TR,), "arbitrary" (stats accumulate across the whole grid).
def _mm_stats_kernel(x_ref, w_ref, y_ref, sum_ref, sq_ref):
    @pl.when(pl.program_id(0) == 0)
    def _init():
        sum_ref[...] = jnp.zeros_like(sum_ref)
        sq_ref[...] = jnp.zeros_like(sq_ref)

    acc = jnp.dot(x_ref[...].astype(jnp.bfloat16), w_ref[...],
                  preferred_element_type=jnp.float32)          # (TR, Cout_p) f32
    y_ref[...] = acc
    sum_ref[...] = sum_ref[...] + jnp.sum(acc, axis=0, keepdims=True)
    sq_ref[...] = sq_ref[...] + jnp.sum(acc * acc, axis=0, keepdims=True)


# ---------------------------------------------------------------------------
# Kernel 1b: KxK conv (stride 1) via in-kernel im2col + ONE bf16 matmul with
# K = KH*KW*Cin_p, plus BN statistics.  Grid: (N,), "arbitrary".
def _conv_stats_kernel(x_ref, w_ref, y_ref, sum_ref, sq_ref, col_ref,
                       *, KH, KW, Ho, Wo, Cin_p):
    @pl.when(pl.program_id(0) == 0)
    def _init():
        sum_ref[...] = jnp.zeros_like(sum_ref)
        sq_ref[...] = jnp.zeros_like(sq_ref)

    # im2col: the KH*KW shifted windows laid side-by-side on the lane axis
    # (each slab is 128-lane aligned), stored once into a VMEM scratch.
    for kh in range(KH):
        for kw in range(KW):
            tap = x_ref[:, kh:kh + Ho, kw:kw + Wo, :].reshape(Ho * Wo, Cin_p)
            t = kh * KW + kw
            col_ref[:, t * Cin_p:(t + 1) * Cin_p] = tap.astype(jnp.bfloat16)

    acc = jnp.dot(col_ref[...], w_ref[...],
                  preferred_element_type=jnp.float32)          # (Ho*Wo, Cout_p)
    y_ref[...] = acc.reshape(y_ref.shape)
    sum_ref[...] = sum_ref[...] + jnp.sum(acc, axis=0, keepdims=True)
    sq_ref[...] = sq_ref[...] + jnp.sum(acc * acc, axis=0, keepdims=True)


# ---------------------------------------------------------------------------
# Kernel 2: folded BN affine (single-pass stats) + optional residual + ReLU.
# Grid: (rows // TR,), "parallel" (megacore on v7x).
def _bn_act_kernel(*refs, count, eps, relu, has_residual):
    if has_residual:
        y_ref, sum_ref, sq_ref, gamma_ref, beta_ref, res_ref, o_ref = refs
    else:
        y_ref, sum_ref, sq_ref, gamma_ref, beta_ref, o_ref = refs
        res_ref = None

    inv_count = 1.0 / count
    mean = sum_ref[...] * inv_count                            # (1, Cp)
    var = jnp.maximum(sq_ref[...] * inv_count - mean * mean, 0.0)
    scale = gamma_ref[...] * jax.lax.rsqrt(var + eps)
    shift = beta_ref[...] - mean * scale

    y = y_ref[...] * scale + shift
    if has_residual:
        y = y + res_ref[...]
    if relu:
        y = jnp.maximum(y, 0.0)
    o_ref[...] = y


# ---------------------------------------------------------------------------
# pallas_call wrappers
def _matmul_stats(x2d, w_bf16):
    rows, cin_p = x2d.shape
    cout_p = w_bf16.shape[1]
    tr = _row_tile(rows)
    return pl.pallas_call(
        _mm_stats_kernel,
        grid=(rows // tr,),
        in_specs=[pl.BlockSpec((tr, cin_p), lambda i: (i, 0)),
                  pl.BlockSpec((cin_p, cout_p), lambda i: (0, 0))],
        out_specs=[pl.BlockSpec((tr, cout_p), lambda i: (i, 0)),
                   pl.BlockSpec((1, cout_p), lambda i: (0, 0)),
                   pl.BlockSpec((1, cout_p), lambda i: (0, 0))],
        out_shape=(jax.ShapeDtypeStruct((rows, cout_p), jnp.float32),
                   jax.ShapeDtypeStruct((1, cout_p), jnp.float32),
                   jax.ShapeDtypeStruct((1, cout_p), jnp.float32)),
        compiler_params=pltpu.CompilerParams(
            dimension_semantics=("arbitrary",),
            vmem_limit_bytes=_VMEM_LIMIT),
    )(x2d, w_bf16)


def _conv_stats(xp, w_bf16, *, KH, KW, Ho, Wo):
    n, hp, wp, cin_p = xp.shape
    cout_p = w_bf16.shape[1]
    kernel = functools.partial(_conv_stats_kernel, KH=KH, KW=KW,
                               Ho=Ho, Wo=Wo, Cin_p=cin_p)
    return pl.pallas_call(
        kernel,
        grid=(n,),
        in_specs=[pl.BlockSpec((1, hp, wp, cin_p), lambda b: (b, 0, 0, 0)),
                  pl.BlockSpec((KH * KW * cin_p, cout_p), lambda b: (0, 0))],
        out_specs=[pl.BlockSpec((1, Ho, Wo, cout_p), lambda b: (b, 0, 0, 0)),
                   pl.BlockSpec((1, cout_p), lambda b: (0, 0)),
                   pl.BlockSpec((1, cout_p), lambda b: (0, 0))],
        out_shape=(jax.ShapeDtypeStruct((n, Ho, Wo, cout_p), jnp.float32),
                   jax.ShapeDtypeStruct((1, cout_p), jnp.float32),
                   jax.ShapeDtypeStruct((1, cout_p), jnp.float32)),
        scratch_shapes=[pltpu.VMEM((Ho * Wo, KH * KW * cin_p), jnp.bfloat16)],
        compiler_params=pltpu.CompilerParams(
            dimension_semantics=("arbitrary",),
            vmem_limit_bytes=_VMEM_LIMIT),
    )(xp, w_bf16)


def _bn_act(y2d, s, sq, gamma_p, beta_p, *, count, relu, residual2d, eps=_EPS):
    rows, cp = y2d.shape
    tr = _row_tile(rows)
    kernel = functools.partial(_bn_act_kernel, count=float(count), eps=eps,
                               relu=relu, has_residual=residual2d is not None)
    in_specs = [pl.BlockSpec((tr, cp), lambda i: (i, 0)),
                pl.BlockSpec((1, cp), lambda i: (0, 0)),
                pl.BlockSpec((1, cp), lambda i: (0, 0)),
                pl.BlockSpec((1, cp), lambda i: (0, 0)),
                pl.BlockSpec((1, cp), lambda i: (0, 0))]
    args = [y2d, s, sq, gamma_p, beta_p]
    if residual2d is not None:
        in_specs.append(pl.BlockSpec((tr, cp), lambda i: (i, 0)))
        args.append(residual2d)
    return pl.pallas_call(
        kernel,
        grid=(rows // tr,),
        in_specs=in_specs,
        out_specs=pl.BlockSpec((tr, cp), lambda i: (i, 0)),
        out_shape=jax.ShapeDtypeStruct((rows, cp), jnp.float32),
        compiler_params=pltpu.CompilerParams(
            dimension_semantics=("parallel",),
            vmem_limit_bytes=_VMEM_LIMIT),
    )(*args)


# ---------------------------------------------------------------------------
# Per-layer wrappers (conv_bn_relu equivalents, NHWC channel-padded I/O)
def _pad_gamma_beta(gamma, beta, cout, cout_p):
    # Pad gamma/beta with ZEROS so padded output channels stay exactly 0.
    g = jnp.pad(gamma.astype(jnp.float32), (0, cout_p - cout)).reshape(1, cout_p)
    b = jnp.pad(beta.astype(jnp.float32), (0, cout_p - cout)).reshape(1, cout_p)
    return g, b


def _conv1x1_bn_act(x_nhwc, w_oihw, gamma, beta, *, stride=1, relu=True,
                    residual=None, eps=_EPS):
    """1x1 conv (bias-free) + training-mode BN (+ fused residual) (+ ReLU)."""
    if stride > 1:                                   # stride handled outside the kernel
        x_nhwc = x_nhwc[:, ::stride, ::stride, :]
    n, h, w, cin_p = x_nhwc.shape
    cout, cin = w_oihw.shape[0], w_oihw.shape[1]
    cout_p = _round_up(cout, _LANE)

    wk = jnp.transpose(w_oihw[:, :, 0, 0], (1, 0))             # (Cin, Cout)
    wk = jnp.pad(wk, ((0, cin_p - cin), (0, cout_p - cout))).astype(jnp.bfloat16)

    rows = n * h * w
    y2d, s, sq = _matmul_stats(x_nhwc.reshape(rows, cin_p), wk)

    g, b = _pad_gamma_beta(gamma, beta, cout, cout_p)
    res2d = None if residual is None else residual.reshape(rows, cout_p)
    out2d = _bn_act(y2d, s, sq, g, b, count=rows, relu=relu,
                    residual2d=res2d, eps=eps)
    return out2d.reshape(n, h, w, cout_p)


def _convkxk_bn_act(x_nhwc, w_oihw, gamma, beta, *, padding=1, relu=True,
                    eps=_EPS):
    """KxK conv (stride 1, bias-free) + training-mode BN (+ ReLU)."""
    n, h, w, cin_p = x_nhwc.shape
    cout, cin, kh, kw = w_oihw.shape
    cout_p = _round_up(cout, _LANE)
    ho = h + 2 * padding - kh + 1
    wo = w + 2 * padding - kw + 1

    # TODO(synk): feed the KxK halo through the BlockSpec index_map instead of a
    # wrapper-side jnp.pad of the full feature map.
    xp = jnp.pad(x_nhwc, ((0, 0), (padding, padding), (padding, padding), (0, 0)))

    wk = jnp.transpose(w_oihw, (2, 3, 1, 0))                   # HWIO
    wk = jnp.pad(wk, ((0, 0), (0, 0), (0, cin_p - cin), (0, cout_p - cout)))
    wk = wk.reshape(kh * kw * cin_p, cout_p).astype(jnp.bfloat16)

    y, s, sq = _conv_stats(xp, wk, KH=kh, KW=kw, Ho=ho, Wo=wo)

    g, b = _pad_gamma_beta(gamma, beta, cout, cout_p)
    rows = n * ho * wo
    out2d = _bn_act(y.reshape(rows, cout_p), s, sq, g, b, count=rows,
                    relu=relu, residual2d=None, eps=eps)
    return out2d.reshape(n, ho, wo, cout_p)


# ---------------------------------------------------------------------------
# BottleNeck forward (training-mode BatchNorm, matching the PyTorch module)
def bottleneck_forward(x_nchw, params, *, stride=1, downsample=False,
                       changeDim=False, eps=_EPS):
    in_ch = params["w1"].shape[1]
    out_ch = params["w3"].shape[0]
    cin_p = _round_up(in_ch, _LANE)

    # NCHW -> NHWC once for the whole block; pad channels to a lane multiple.
    x = jnp.transpose(x_nchw, (0, 2, 3, 1)).astype(jnp.float32)
    x = jnp.pad(x, ((0, 0), (0, 0), (0, 0), (0, cin_p - in_ch)))

    # main path: 1x1 (stride) -> KxK (pad 1) -> 1x1 (activation deferred)
    h = _conv1x1_bn_act(x, params["w1"], params["g1"], params["b1"],
                        stride=stride, relu=True, eps=eps)
    h = _convkxk_bn_act(h, params["w2"], params["g2"], params["b2"],
                        padding=1, relu=True, eps=eps)

    # shortcut
    if changeDim:
        xstride = 2 if downsample else 1
        res = _conv1x1_bn_act(x, params["wx"], params["gx"], params["bx"],
                              stride=xstride, relu=False, eps=eps)
    else:
        res = x          # identity shortcut (requires in_ch == out_ch, stride 1)

    # third conv: its epilogue fuses BN affine + residual add + final ReLU.
    out = _conv1x1_bn_act(h, params["w3"], params["g3"], params["b3"],
                          stride=1, relu=True, residual=res, eps=eps)

    out = out[:, :, :, :out_ch]                    # drop channel padding
    return jnp.transpose(out, (0, 3, 1, 2))        # back to NCHW


# ---------------------------------------------------------------------------
# Pure-JAX reference (lax conv + manual training-mode BN)
def _conv_bn_ref(x, w, gamma, beta, *, stride, padding, relu, eps=_EPS):
    y = jax.lax.conv_general_dilated(
        x, w, (stride, stride), ((padding, padding), (padding, padding)),
        dimension_numbers=("NCHW", "OIHW", "NCHW"))
    mean = jnp.mean(y, axis=(0, 2, 3), keepdims=True)
    var = jnp.mean((y - mean) ** 2, axis=(0, 2, 3), keepdims=True)
    y = (y - mean) * jax.lax.rsqrt(var + eps)
    y = y * gamma.reshape(1, -1, 1, 1) + beta.reshape(1, -1, 1, 1)
    return jnp.maximum(y, 0.0) if relu else y


def _bottleneck_ref(x, params, *, stride, downsample, changeDim, eps=_EPS):
    out = _conv_bn_ref(x, params["w1"], params["g1"], params["b1"],
                       stride=stride, padding=0, relu=True, eps=eps)
    out = _conv_bn_ref(out, params["w2"], params["g2"], params["b2"],
                       stride=1, padding=1, relu=True, eps=eps)
    out = _conv_bn_ref(out, params["w3"], params["g3"], params["b3"],
                       stride=1, padding=0, relu=False, eps=eps)
    if changeDim:
        xstride = 2 if downsample else 1
        res = _conv_bn_ref(x, params["wx"], params["gx"], params["bx"],
                           stride=xstride, padding=0, relu=False, eps=eps)
    else:
        res = x
    return jnp.maximum(out + res, 0.0)


if __name__ == "__main__":
    key = jax.random.PRNGKey(0)
    ks = jax.random.split(key, 10)

    # BottleNeck(in_channels=4, out_channels=8, mid_channels=4, kernel_size=3,
    #            stride=1, downsample=False, changeDim=True)
    N, Cin, H, W = 2, 4, 16, 16
    Cmid, Cout, K = 4, 8, 3

    x = jax.random.normal(ks[0], (N, Cin, H, W), jnp.float32)
    params = {
        "w1": 0.1 * jax.random.normal(ks[1], (Cmid, Cin, 1, 1), jnp.float32),
        "g1": 1.0 + 0.1 * jax.random.normal(ks[2], (Cmid,), jnp.float32),
        "b1": 0.1 * jax.random.normal(ks[3], (Cmid,), jnp.float32),
        "w2": 0.1 * jax.random.normal(ks[4], (Cmid, Cmid, K, K), jnp.float32),
        "g2": jnp.ones((Cmid,), jnp.float32),
        "b2": jnp.zeros((Cmid,), jnp.float32),
        "w3": 0.1 * jax.random.normal(ks[5], (Cout, Cmid, 1, 1), jnp.float32),
        "g3": 1.0 + 0.1 * jax.random.normal(ks[6], (Cout,), jnp.float32),
        "b3": 0.1 * jax.random.normal(ks[7], (Cout,), jnp.float32),
        # projection shortcut (changeDim=True): 1x1 conv + BN
        "wx": 0.1 * jax.random.normal(ks[8], (Cout, Cin, 1, 1), jnp.float32),
        "gx": jnp.ones((Cout,), jnp.float32),
        "bx": jnp.zeros((Cout,), jnp.float32),
    }

    out = bottleneck_forward(x, params, stride=1, downsample=False,
                             changeDim=True)
    out = jax.block_until_ready(out)

    ref = _bottleneck_ref(x, params, stride=1, downsample=False, changeDim=True)

    assert out.shape == (N, Cout, H, W)
    assert bool(jnp.all(jnp.isfinite(out)))
    # bf16 MXU operands vs f32 reference -> modest tolerance
    assert jnp.allclose(out, ref, rtol=5e-2, atol=5e-2), \
        float(jnp.max(jnp.abs(out - ref)))

    print("KERNEL_OK")
</pallas_src>

<mosaic_0001>
module attributes {stable_mosaic.version = 11 : i64} {
  func.func @_mm_stats_kernel(%arg0: i32, %arg1: memref<256x128xf32, #tpu.memory_space<vmem>>, %arg2: memref<128x128xbf16, #tpu.memory_space<vmem>>, %arg3: memref<256x128xf32, #tpu.memory_space<vmem>>, %arg4: memref<1x128xf32, #tpu.memory_space<vmem>>, %arg5: memref<1x128xf32, #tpu.memory_space<vmem>>) attributes {dimension_semantics = [#tpu.dimension_semantics<arbitrary>], iteration_bounds = array<i64: 2>, scalar_prefetch = 0 : i64, scratch_operands = 0 : i64, tpu.core_type = #tpu.core_type<tc>, window_params = [{transform_indices = @transform_0, window_bounds = array<i64: 256, 128>}, {pipeline_mode = #tpu.pipeline_mode<synchronous>, transform_indices = @transform_1, window_bounds = array<i64: 128, 128>}, {transform_indices = @transform_2, window_bounds = array<i64: 256, 128>}, {pipeline_mode = #tpu.pipeline_mode<synchronous>, transform_indices = @transform_3, window_bounds = array<i64: 1, 128>}, {pipeline_mode = #tpu.pipeline_mode<synchronous>, transform_indices = @transform_4, window_bounds = array<i64: 1, 128>}]} {
    %c0_i32 = arith.constant 0 : i32
    %0 = arith.cmpi eq, %arg0, %c0_i32 : i32
    %1 = arith.extui %0 : i1 to i32
    %c0_i32_0 = arith.constant 0 : i32
    %2 = arith.cmpi ne, %1, %c0_i32_0 : i32
    scf.if %2 {
      %cst_16 = arith.constant 0.000000e+00 : f32
      %19 = vector.broadcast %cst_16 : f32 to vector<1x128xf32>
      %c0_17 = arith.constant 0 : index
      %c0_18 = arith.constant 0 : index
      %20 = vector.load %arg4[%c0_17, %c0_18] : memref<1x128xf32, #tpu.memory_space<vmem>>, vector<1x128xf32>
      tpu.vector_store %arg4[%c0_17, %c0_18], %19 {strides = array<i32>} : memref<1x128xf32, #tpu.memory_space<vmem>>, vector<1x128xf32>,
      %cst_19 = arith.constant 0.000000e+00 : f32
      %21 = vector.broadcast %cst_19 : f32 to vector<1x128xf32>
      %c0_20 = arith.constant 0 : index
      %c0_21 = arith.constant 0 : index
      %22 = vector.load %arg5[%c0_20, %c0_21] : memref<1x128xf32, #tpu.memory_space<vmem>>, vector<1x128xf32>
      tpu.vector_store %arg5[%c0_20, %c0_21], %21 {strides = array<i32>} : memref<1x128xf32, #tpu.memory_space<vmem>>, vector<1x128xf32>,
    } else {
    }
    %c0 = arith.constant 0 : index
    %c0_1 = arith.constant 0 : index
    %3 = vector.load %arg1[%c0, %c0_1] : memref<256x128xf32, #tpu.memory_space<vmem>>, vector<256x128xf32>
    %4 = arith.truncf %3 : vector<256x128xf32> to vector<256x128xbf16>
    %c0_2 = arith.constant 0 : index
    %c0_3 = arith.constant 0 : index
    %5 = vector.load %arg2[%c0_2, %c0_3] : memref<128x128xbf16, #tpu.memory_space<vmem>>, vector<128x128xbf16>
    %cst = arith.constant dense<0.000000e+00> : vector<256x128xf32>
    %6 = tpu.matmul %4, %5, %cst {dimension_numbers = #tpu.dot_dimension_numbers<[1], [0], [0], [1], [0, 0, 1, 1], [], []>} : vector<256x128xbf16>, vector<128x128xbf16>, vector<256x128xf32> -> vector<256x128xf32>
    %c0_4 = arith.constant 0 : index
    %c0_5 = arith.constant 0 : index
    %7 = vector.load %arg3[%c0_4, %c0_5] : memref<256x128xf32, #tpu.memory_space<vmem>>, vector<256x128xf32>
    tpu.vector_store %arg3[%c0_4, %c0_5], %6 {strides = array<i32>} : memref<256x128xf32, #tpu.memory_space<vmem>>, vector<256x128xf32>,
    %c0_6 = arith.constant 0 : index
    %c0_7 = arith.constant 0 : index
    %8 = vector.load %arg4[%c0_6, %c0_7] : memref<1x128xf32, #tpu.memory_space<vmem>>, vector<1x128xf32>
    %cst_8 = arith.constant dense<0.000000e+00> : vector<128xf32>
    %9 = vector.multi_reduction <add>, %6, %cst_8 [0] : vector<256x128xf32> to vector<128xf32>
    %10 = vector.shape_cast %9 : vector<128xf32> to vector<1x128xf32>
    %11 = arith.addf %8, %10 : vector<1x128xf32>
    %c0_9 = arith.constant 0 : index
    %c0_10 = arith.constant 0 : index
    %12 = vector.load %arg4[%c0_9, %c0_10] : memref<1x128xf32, #tpu.memory_space<vmem>>, vector<1x128xf32>
    tpu.vector_store %arg4[%c0_9, %c0_10], %11 {strides = array<i32>} : memref<1x128xf32, #tpu.memory_space<vmem>>, vector<1x128xf32>,
    %c0_11 = arith.constant 0 : index
    %c0_12 = arith.constant 0 : index
    %13 = vector.load %arg5[%c0_11, %c0_12] : memref<1x128xf32, #tpu.memory_space<vmem>>, vector<1x128xf32>
    %14 = arith.mulf %6, %6 : vector<256x128xf32>
    %cst_13 = arith.constant dense<0.000000e+00> : vector<128xf32>
    %15 = vector.multi_reduction <add>, %14, %cst_13 [0] : vector<256x128xf32> to vector<128xf32>
    %16 = vector.shape_cast %15 : vector<128xf32> to vector<1x128xf32>
    %17 = arith.addf %13, %16 : vector<1x128xf32>
    %c0_14 = arith.constant 0 : index
    %c0_15 = arith.constant 0 : index
    %18 = vector.load %arg5[%c0_14, %c0_15] : memref<1x128xf32, #tpu.memory_space<vmem>>, vector<1x128xf32>
    tpu.vector_store %arg5[%c0_14, %c0_15], %17 {strides = array<i32>} : memref<1x128xf32, #tpu.memory_space<vmem>>, vector<1x128xf32>,
    return
  }
  func.func @transform_0(%arg0: i32) -> (i32, i32) {
    %c0_i32 = arith.constant 0 : i32
    %c0_i32_0 = arith.constant 0 : i32
    return %arg0, %c0_i32 : i32, i32
  }
  func.func @transform_1(%arg0: i32) -> (i32, i32) {
    %c0_i32 = arith.constant 0 : i32
    %c0_i32_0 = arith.constant 0 : i32
    %c0_i32_1 = arith.constant 0 : i32
    return %c0_i32, %c0_i32_0 : i32, i32
  }
  func.func @transform_2(%arg0: i32) -> (i32, i32) {
    %c0_i32 = arith.constant 0 : i32
    %c0_i32_0 = arith.constant 0 : i32
    return %arg0, %c0_i32 : i32, i32
  }
  func.func @transform_3(%arg0: i32) -> (i32, i32) {
    %c0_i32 = arith.constant 0 : i32
    %c0_i32_0 = arith.constant 0 : i32
    %c0_i32_1 = arith.constant 0 : i32
    return %c0_i32, %c0_i32_0 : i32, i32
  }
  func.func @transform_4(%arg0: i32) -> (i32, i32) {
    %c0_i32 = arith.constant 0 : i32
    %c0_i32_0 = arith.constant 0 : i32
    %c0_i32_1 = arith.constant 0 : i32
    return %c0_i32, %c0_i32_0 : i32, i32
  }
}

</mosaic_0001>

<llo_original>
// kernel: tpu_custom_call.1
$region0: #{tpu_custom_call.1}
  #allocation0 [shape = 'u32[]', space=smem, size = 0x4, offset = 0x4, fixed_abs, tag = 'smem constant byte address 0x4 - core index']
  #allocation1 [shape = 'u32[72,128]{1,0:T(1,128)}', space=vmem, size = 0x9000, scoped, tag = 'internal scratch']
  %s0 = inlined_call_operand.hbm [shape: f32[512,128], index: 0, kind: input, shape index: {}]
  %s1 = inlined_call_operand.hbm [shape: bf16[128,128], index: 1, kind: input, shape index: {}]
  %s2 = inlined_call_operand.hbm [shape: f32[512,128], index: 2, kind: output, shape index: {0}]
  %s3 = inlined_call_operand.hbm [shape: f32[1,128], index: 3, kind: output, shape index: {1}]
  %s4 = inlined_call_operand.hbm [shape: f32[1,128], index: 4, kind: output, shape index: {2}]
  %5 = xla_tuple %s2, %s3, %s4
  %s6 = sld [smem:[#allocation0]]
  $region69: #{tpu_custom_call.1} parent=0
    _
  %s8 = ssub.s32 1, %s6
  %s9 = scalar_select 0, %s8, %s6
  $region1: #{tpu_custom_call.1} parent=0
    #allocation2 [shape = 'u8[262144]{0}', space=vmem, size = 0x40000, scoped, tag = 'input window, operand 0']
    #allocation3 [shape = 's32[2]{0}', space=sflag, size = 0x8, scoped, tag = 'scoped memory for tpu_custom_call.1']
    #allocation4 [shape = 's32[2]{0}', space=sflag, size = 0x8, scoped, tag = 'scoped memory for tpu_custom_call.1']
    #allocation5 [shape = 'u8[32768]{0}', space=vmem, size = 0x8000, scoped, tag = 'input window, operand 1, single buffered']
    #allocation6 [shape = 's32[1]{0}', space=sflag, size = 0x4, scoped, tag = 'scoped memory for tpu_custom_call.1']
    #allocation7 [shape = 'u8[262144]{0}', space=vmem, size = 0x40000, scoped, tag = 'output window, operand 0']
    #allocation8 [shape = 'u8[512]{0}', space=vmem, size = 0x400, scoped, tag = 'output window, operand 1, single buffered']
    #allocation9 [shape = 's32[1]{0}', space=sflag, size = 0x4, scoped, tag = 'scoped memory for tpu_custom_call.1']
    #allocation10 [shape = 'u8[512]{0}', space=vmem, size = 0x400, scoped, tag = 'output window, operand 2, single buffered']
    %10 = vsyncpa [#allocation3], 0
    %s11 = scalar_lea.sflag [#allocation3], 1
    %12 = vsyncpa %s11, 0
    %13 = vsyncpa [#allocation6], 0
    %14 = vsyncpa [#allocation4], 0
    %s15 = scalar_lea.sflag [#allocation4], 1
    %16 = vsyncpa %s15, 0
    %17 = vsyncpa [#allocation9], 0
    loop: start=0, step=1, limit=4
    $region2: #{tpu_custom_call.1} parent=1 // loop_pre_header
      _
    $region3: #{tpu_custom_call.1} parent=1 // loop_header
      %s19 = sphi 0, %s23
      %p20 = scmp.ge.s32.totalorder %s19, 4
      %s29 = sphi 0, %s31
      %s32 = sphi 0, %s29
      %s33 = sphi 0, %s32
      %s49 = sphi 0, %s33
      %s53 = sphi 0, %s53
      %s55 = sphi 0, %s53
      %s56 = sphi 0, %s55
      %s70 = sphi 0, %s56
      %s76 = sphi 0, %s78
      %s79 = sphi 0, %s76
      %s80 = sphi 0, %s79
      %s96 = sphi 0, %s80
      %s100 = sphi 0, %s100
      %s102 = sphi 0, %s100
      %s103 = sphi 0, %s102
      %s117 = sphi 0, %s103
      %s121 = sphi 0, %s121
      %s123 = sphi 0, %s121
      %s124 = sphi 0, %s123
      %s138 = sphi 0, %s124
    $region4: #{tpu_custom_call.1} parent=1 // loop_header_branch
      %22 = sbr.rel (%p20) target = $region8
    $region5: #{tpu_custom_call.1} parent=1 // loop_body
      %s24 = ssub.s32 %s19, 1
      %s25 = ssub.s32 %s19, 2
      %s26 = sadd.s32 %s19, 1
      %s27 = ssub.s32 %s19, %s26
      %p28 = scmp.eq.s32.totalorder %s27, 0
      %s30 = sadd.s32 %s29, 1
      %s31 = scalar_select %p28, %s29, %s30
      %p34 = pneg %p28
      %p35 = scmp.eq.s32.totalorder %s19, 1
      %p36 = por %p34, %p35
      %p37 = scmp.ne.s32.totalorder %s29, %s32
      %p38 = scmp.eq.s32.totalorder %s19, 0
      %p39 = por %p37, %p38
      %p40 = scmp.ne.s32.totalorder %s29, %s32
      %p41 = scmp.eq.s32.totalorder %s24, 1
      %p42 = por %p40, %p41
      %p43 = scmp.ne.s32.totalorder %s32, %s33
      %p44 = scmp.eq.s32.totalorder %s24, 0
      %p45 = por %p43, %p44
      %p46 = scmp.ne.s32.totalorder %s32, %s33
      %p47 = scmp.eq.s32.totalorder %s25, 1
      %p48 = por %p46, %p47
      %p50 = scmp.ne.s32.totalorder %s33, %s49
      %p51 = scmp.eq.s32.totalorder %s25, 0
      %p52 = por %p50, %p51
      %s54 = sadd.s32 %s53, 1
      %p57 = scmp.eq.s32.totalorder %s19, 1
      %p58 = scmp.ne.s32.totalorder %s53, %s55
      %p59 = scmp.eq.s32.totalorder %s19, 0
      %p60 = por %p58, %p59
      %p61 = scmp.ne.s32.totalorder %s53, %s55
      %p62 = scmp.eq.s32.totalorder %s24, 1
      %p63 = por %p61, %p62
      %p64 = scmp.ne.s32.totalorder %s55, %s56
      %p65 = scmp.eq.s32.totalorder %s24, 0
      %p66 = por %p64, %p65
      %p67 = scmp.ne.s32.totalorder %s55, %s56
      %p68 = scmp.eq.s32.totalorder %s25, 1
      %p69 = por %p67, %p68
      %p71 = scmp.ne.s32.totalorder %s56, %s70
      %p72 = scmp.eq.s32.totalorder %s25, 0
      %p73 = por %p71, %p72
      %s74 = ssub.s32 %s19, %s26
      %p75 = scmp.eq.s32.totalorder %s74, 0
      %s77 = sadd.s32 %s76, 1
      %s78 = scalar_select %p75, %s76, %s77
      %p81 = pneg %p75
      %p82 = scmp.eq.s32.totalorder %s19, 1
      %p83 = por %p81, %p82
      %p84 = scmp.ne.s32.totalorder %s76, %s79
      %p85 = scmp.eq.s32.totalorder %s19, 0
      %p86 = por %p84, %p85
      %p87 = scmp.ne.s32.totalorder %s76, %s79
      %p88 = scmp.eq.s32.totalorder %s24, 1
      %p89 = por %p87, %p88
      %p90 = scmp.ne.s32.totalorder %s79, %s80
      %p91 = scmp.eq.s32.totalorder %s24, 0
      %p92 = por %p90, %p91
      %p93 = scmp.ne.s32.totalorder %s79, %s80
      %p94 = scmp.eq.s32.totalorder %s25, 1
      %p95 = por %p93, %p94
      %p97 = scmp.ne.s32.totalorder %s80, %s96
      %p98 = scmp.eq.s32.totalorder %s25, 0
      %p99 = por %p97, %p98
      %s101 = sadd.s32 %s100, 1
      %p104 = scmp.eq.s32.totalorder %s19, 1
      %p105 = scmp.ne.s32.totalorder %s100, %s102
      %p106 = scmp.eq.s32.totalorder %s19, 0
      %p107 = por %p105, %p106
      %p108 = scmp.ne.s32.totalorder %s100, %s102
      %p109 = scmp.eq.s32.totalorder %s24, 1
      %p110 = por %p108, %p109
      %p111 = scmp.ne.s32.totalorder %s102, %s103
      %p112 = scmp.eq.s32.totalorder %s24, 0
      %p113 = por %p111, %p112
      %p114 = scmp.ne.s32.totalorder %s102, %s103
      %p115 = scmp.eq.s32.totalorder %s25, 1
      %p116 = por %p114, %p115
      %p118 = scmp.ne.s32.totalorder %s103, %s117
      %p119 = scmp.eq.s32.totalorder %s25, 0
      %p120 = por %p118, %p119
      %s122 = sadd.s32 %s121, 1
      %p125 = scmp.eq.s32.totalorder %s19, 1
      %p126 = scmp.ne.s32.totalorder %s121, %s123
      %p127 = scmp.eq.s32.totalorder %s19, 0
      %p128 = por %p126, %p127
      %p129 = scmp.ne.s32.totalorder %s121, %s123
      %p130 = scmp.eq.s32.totalorder %s24, 1
      %p131 = por %p129, %p130
      %p132 = scmp.ne.s32.totalorder %s123, %s124
      %p133 = scmp.eq.s32.totalorder %s24, 0
      %p134 = por %p132, %p133
      %p135 = scmp.ne.s32.totalorder %s123, %s124
      %p136 = scmp.eq.s32.totalorder %s25, 1
      %p137 = por %p135, %p136
      %p139 = scmp.ne.s32.totalorder %s124, %s138
      %p140 = scmp.eq.s32.totalorder %s25, 0
      %p141 = por %p139, %p140
      %p142 = scmp.le.s32.totalorder 1, %s19
      %p143 = scmp.lt.s32.totalorder %s19, 3
      %p144 = pnand %p142, %p143
      %p145 = pneg %p144
      // Predicated region
      $region9: #{tpu_custom_call.1} parent=5 // pred_check
        _
      $region10: #{tpu_custom_call.1} parent=5 // pred_check_branch
        %147 = sbr.rel (%p144) target = $region12
      $region11: #{tpu_custom_call.1} parent=5 // pred_region
        %s148 = ssub.s32 %s19, 1
        // Predicated region
        $region13: #{tpu_custom_call.1} parent=11 // pred_check
          %p149 = pneg %p66
        $region14: #{tpu_custom_call.1} parent=11 // pred_check_branch
          %151 = sbr.rel (%p149) target = $region16
        $region15: #{tpu_custom_call.1} parent=11 // pred_region
          %153 = vsyncadd [#allocation6], 0
          %s154 = sshll.u32 %s1, 4
          %s155 = int_to_ptr.hbm [resolvable:$true] %s154
          %s156 = sshll.u32 [#allocation5], 4
          %s157 = int_to_ptr.vmem [resolvable:$true] %s156
          %162 = dma.hbm_to_vmem [thread:$0]  %s155, 1024, %s157, [#allocation6], 64, 64, 4
        $region16: #{tpu_custom_call.1} parent=11 // pred_fallthru
          _
      $region12: #{tpu_custom_call.1} parent=5 // pred_fallthru
        _
      %p163 = scmp.lt.s32.totalorder %s19, 2
      // Predicated region
      $region17: #{tpu_custom_call.1} parent=5 // pred_check
        %p164 = pneg %p163
      $region18: #{tpu_custom_call.1} parent=5 // pred_check_branch
        %166 = sbr.rel (%p164) target = $region20
      $region19: #{tpu_custom_call.1} parent=5 // pred_region
        // Predicated region
        $region21: #{tpu_custom_call.1} parent=19 // pred_check
          %p167 = pneg %p39
        $region22: #{tpu_custom_call.1} parent=19 // pred_check_branch
          %169 = sbr.rel (%p167) target = $region24
        $region23: #{tpu_custom_call.1} parent=19 // pred_region
          %s170 = sand.u32 %s29, 1
          %s171 = scalar_lea.sflag [#allocation3], %s170
          %s172 = sand.u32 %s29, 1
          %s173 = smul.addr %s172, 256
          %s174 = scalar_lea.vmem [#allocation2], %s173
          %s175 = smul.u32 32, %s19
          %177 = vsyncadd %s171, 0
          %s178 = smul.addr %s175, 8
          %s179 = scalar_lea.hbm %s0, %s178
          %s180 = sshll.u32 %s179, 4
          %s181 = int_to_ptr.hbm [resolvable:$true] %s180
          %s182 = sshll.u32 %s174, 4
          %s183 = int_to_ptr.vmem [resolvable:$true] %s182
          %188 = dma.hbm_to_vmem [thread:$0]  %s181, 4096, %s183, %s171, 128, 128, 8
        $region24: #{tpu_custom_call.1} parent=19 // pred_fallthru
          _
      $region20: #{tpu_custom_call.1} parent=5 // pred_fallthru
        _
      %p189 = scmp.le.s32.totalorder 1, %s19
      %p190 = scmp.lt.s32.totalorder %s19, 3
      %p191 = pnand %p189, %p190
      %p192 = pneg %p191
      // Predicated region
      $region25: #{tpu_custom_call.1} parent=5 // pred_check
        _
      $region26: #{tpu_custom_call.1} parent=5 // pred_check_branch
        %194 = sbr.rel (%p191) target = $region28
      $region27: #{tpu_custom_call.1} parent=5 // pred_region
        %s195 = ssub.s32 %s19, 1
        %s196 = sand.u32 %s32, 1
        %s197 = scalar_lea.sflag [#allocation3], %s196
        %s198 = sand.u32 %s32, 1
        %s199 = smul.addr %s198, 256
        %s200 = scalar_lea.vmem [#allocation2], %s199
        // Predicated region
        $region29: #{tpu_custom_call.1} parent=27 // pred_check
          %p201 = pneg %p45
        $region30: #{tpu_custom_call.1} parent=27 // pred_check_branch
          %203 = sbr.rel (%p201) target = $region32
        $region31: #{tpu_custom_call.1} parent=27 // pred_region
          %205 = dma.done %s197, 4096
        $region32: #{tpu_custom_call.1} parent=27 // pred_fallthru
          _
        // Predicated region
        $region33: #{tpu_custom_call.1} parent=27 // pred_check
          %p206 = pneg %p66
        $region34: #{tpu_custom_call.1} parent=27 // pred_check_branch
          %208 = sbr.rel (%p206) target = $region36
        $region35: #{tpu_custom_call.1} parent=27 // pred_region
          %210 = dma.done [#allocation6], 1024
        $region36: #{tpu_custom_call.1} parent=27 // pred_fallthru
          _
        %s211 = sand.u32 %s32, 1
        %s212 = scalar_lea.sflag [#allocation3], %s211
        %s213 = sand.u32 %s32, 1
        %s214 = smul.addr %s213, 256
        %s215 = scalar_lea.vmem [#allocation2], %s214
        %p216 = pneg %p45
        %p217 = pneg %p42
        %p218 = pneg %p66
        %p219 = pneg %p63
        %p220 = pneg %p92
        %p221 = pneg %p89
        %s222 = sand.u32 %s79, 1
        %s223 = scalar_lea.sflag [#allocation4], %s222
        %s224 = sand.u32 %s79, 1
        %s225 = smul.addr %s224, 256
        %s226 = scalar_lea.vmem [#allocation7], %s225
        %p227 = pneg %p113
        %p228 = pneg %p110
        %p229 = pneg %p134
        %p230 = pneg %p131
        %s231 = smul.u32 32, %s24
        %s232 = smul.u32 32, %s24
        %p233 = scmp.eq.s32.totalorder %s24, 0
        // Predicated region
        $region37: #{tpu_custom_call.1} parent=27 // pred_check
          %p234 = pneg %p233
        $region38: #{tpu_custom_call.1} parent=27 // pred_check_branch
          %236 = sbr.rel (%p234) target = $region40
        $region39: #{tpu_custom_call.1} parent=27 // pred_region
          %237 = vst [vmem:[#allocation8] sm:$0x1] 0.0
          %238 = vst [vmem:[#allocation10] sm:$0x1] 0.0
        $region40: #{tpu_custom_call.1} parent=27 // pred_fallthru
          _
        %v239 = vld [vmem:[%s200] sm:$0xff]
        %v240 = vld [vmem:[%s200 + $0x8] sm:$0xff]
        %v241 = vld [vmem:[%s200 + $0x10] sm:$0xff]
        %v242 = vld [vmem:[%s200 + $0x18] sm:$0xff]
        %v243 = vld [vmem:[%s200 + $0x20] sm:$0xff]
        %v244 = vld [vmem:[%s200 + $0x28] sm:$0xff]
        %v245 = vld [vmem:[%s200 + $0x30] sm:$0xff]
        %v246 = vld [vmem:[%s200 + $0x38] sm:$0xff]
        %v247 = vld [vmem:[%s200 + $0x40] sm:$0xff]
        %v248 = vld [vmem:[%s200 + $0x48] sm:$0xff]
        %v249 = vld [vmem:[%s200 + $0x50] sm:$0xff]
        %v250 = vld [vmem:[%s200 + $0x58] sm:$0xff]
        %v251 = vld [vmem:[%s200 + $0x60] sm:$0xff]
        %v252 = vld [vmem:[%s200 + $0x68] sm:$0xff]
        %v253 = vld [vmem:[%s200 + $0x70] sm:$0xff]
        %v254 = vld [vmem:[%s200 + $0x78] sm:$0xff]
        %v255 = vld [vmem:[%s200 + $0x80] sm:$0xff]
        %v256 = vld [vmem:[%s200 + $0x88] sm:$0xff]
        %v257 = vld [vmem:[%s200 + $0x90] sm:$0xff]
        %v258 = vld [vmem:[%s200 + $0x98] sm:$0xff]
        %v259 = vld [vmem:[%s200 + $0xa0] sm:$0xff]
        %v260 = vld [vmem:[%s200 + $0xa8] sm:$0xff]
        %v261 = vld [vmem:[%s200 + $0xb0] sm:$0xff]
        %v262 = vld [vmem:[%s200 + $0xb8] sm:$0xff]
        %v263 = vld [vmem:[%s200 + $0xc0] sm:$0xff]
        %v264 = vld [vmem:[%s200 + $0xc8] sm:$0xff]
        %v265 = vld [vmem:[%s200 + $0xd0] sm:$0xff]
        %v266 = vld [vmem:[%s200 + $0xd8] sm:$0xff]
        %v267 = vld [vmem:[%s200 + $0xe0] sm:$0xff]
        %v268 = vld [vmem:[%s200 + $0xe8] sm:$0xff]
        %v269 = vld [vmem:[%s200 + $0xf0] sm:$0xff]
        %v270 = vld [vmem:[%s200 + $0xf8] sm:$0xff]
        %v271 = vpack.c.bf16 %v240, %v239
        %v272 = vpack.c.bf16 %v242, %v241
        %v273 = vpack.c.bf16 %v244, %v243
        %v274 = vpack.c.bf16 %v246, %v245
        %v275 = vpack.c.bf16 %v248, %v247
        %v276 = vpack.c.bf16 %v250, %v249
        %v277 = vpack.c.bf16 %v252, %v251
        %v278 = vpack.c.bf16 %v254, %v253
        %v279 = vpack.c.bf16 %v256, %v255
        %v280 = vpack.c.bf16 %v258, %v257
        %v281 = vpack.c.bf16 %v260, %v259
        %v282 = vpack.c.bf16 %v262, %v261
        %v283 = vpack.c.bf16 %v264, %v263
        %v284 = vpack.c.bf16 %v266, %v265
        %v285 = vpack.c.bf16 %v268, %v267
        %v286 = vpack.c.bf16 %v270, %v269
        %v287 = vld [vmem:[#allocation5] sm:$0xf]
        %v288 = vld [vmem:[#allocation5 + $0x4] sm:$0xf]
        %v289 = vld [vmem:[#allocation5 + $0x8] sm:$0xf]
        %v290 = vld [vmem:[#allocation5 + $0xc] sm:$0xf]
        %v291 = vld [vmem:[#allocation5 + $0x10] sm:$0xf]
        %v292 = vld [vmem:[#allocation5 + $0x14] sm:$0xf]
        %v293 = vld [vmem:[#allocation5 + $0x18] sm:$0xf]
        %v294 = vld [vmem:[#allocation5 + $0x1c] sm:$0xf]
        %v295 = vld [vmem:[#allocation5 + $0x20] sm:$0xf]
        %v296 = vld [vmem:[#allocation5 + $0x24] sm:$0xf]
        %v297 = vld [vmem:[#allocation5 + $0x28] sm:$0xf]
        %v298 = vld [vmem:[#allocation5 + $0x2c] sm:$0xf]
        %v299 = vld [vmem:[#allocation5 + $0x30] sm:$0xf]
        %v300 = vld [vmem:[#allocation5 + $0x34] sm:$0xf]
        %v301 = vld [vmem:[#allocation5 + $0x38] sm:$0xf]
        %v302 = vld [vmem:[#allocation5 + $0x3c] sm:$0xf]
        %v319 = vunpack.c.l.b16 %v287
        %v320 = vunpack.c.l.b16 %v288
        %v321 = vunpack.c.l.b16 %v289
        %v322 = vunpack.c.l.b16 %v290
        %v323 = vunpack.c.l.b16 %v291
        %v324 = vunpack.c.l.b16 %v292
        %v325 = vunpack.c.l.b16 %v293
        %v326 = vunpack.c.l.b16 %v294
        %v327 = vunpack.c.l.b16 %v295
        %v328 = vunpack.c.l.b16 %v296
        %v329 = vunpack.c.l.b16 %v297
        %v330 = vunpack.c.l.b16 %v298
        %v331 = vunpack.c.l.b16 %v299
        %v332 = vunpack.c.l.b16 %v300
        %v333 = vunpack.c.l.b16 %v301
        %v334 = vunpack.c.l.b16 %v302
        %v335 = vpack.c.b16 %v320, %v319
        %v336 = vpack.c.b16 %v322, %v321
        %v337 = vpack.c.b16 %v324, %v323
        %v338 = vpack.c.b16 %v326, %v325
        %v339 = vpack.c.b16 %v328, %v327
        %v340 = vpack.c.b16 %v330, %v329
        %v341 = vpack.c.b16 %v332, %v331
        %v342 = vpack.c.b16 %v334, %v333
        %351 = vmatpush.bf16.msra.mxu0 %v342
        %352 = vmatpush.bf16.msra.mxu0 %v341
        %353 = vmatpush.bf16.msra.mxu0 %v340
        %354 = vmatpush.bf16.msra.mxu0 %v339
        %355 = vmatpush.bf16.msra.mxu0 %v338
        %356 = vmatpush.bf16.msra.mxu0 %v337
        %357 = vmatpush.bf16.msra.mxu0 %v336
        %358 = vmatpush.bf16.msra.mxu0 %v335
        %359 = vmatmul.bf16.gmra.mxu0 %v271
        %v360 = vpop.f32.mrf.mxu0
        %v361 = vadd.f32 0.0, %v360
        %v362 = vpop.f32.mrf.mxu0
        %v363 = vadd.f32 0.0, %v362
        %364 = vmatmul.bf16.gmra.mxu0 %v272
        %v365 = vpop.f32.mrf.mxu0
        %v366 = vadd.f32 0.0, %v365
        %v367 = vpop.f32.mrf.mxu0
        %v368 = vadd.f32 0.0, %v367
        %369 = vmatmul.bf16.gmra.mxu0 %v273
        %v370 = vpop.f32.mrf.mxu0
        %v371 = vadd.f32 0.0, %v370
        %v372 = vpop.f32.mrf.mxu0
        %v373 = vadd.f32 0.0, %v372
        %374 = vmatmul.bf16.gmra.mxu0 %v274
        %v375 = vpop.f32.mrf.mxu0
        %v376 = vadd.f32 0.0, %v375
        %v377 = vpop.f32.mrf.mxu0
        %v378 = vadd.f32 0.0, %v377
        %379 = vmatmul.bf16.gmra.mxu0 %v275
        %v380 = vpop.f32.mrf.mxu0
        %v381 = vadd.f32 0.0, %v380
        %v382 = vpop.f32.mrf.mxu0
        %v383 = vadd.f32 0.0, %v382
        %384 = vmatmul.bf16.gmra.mxu0 %v276
        %v385 = vpop.f32.mrf.mxu0
        %v386 = vadd.f32 0.0, %v385
        %v387 = vpop.f32.mrf.mxu0
        %v388 = vadd.f32 0.0, %v387
        %389 = vmatmul.bf16.gmra.mxu0 %v277
        %v390 = vpop.f32.mrf.mxu0
        %v391 = vadd.f32 0.0, %v390
        %v392 = vpop.f32.mrf.mxu0
        %v393 = vadd.f32 0.0, %v392
        %394 = vmatmul.bf16.gmra.mxu0 %v278
        %v395 = vpop.f32.mrf.mxu0
        %v396 = vadd.f32 0.0, %v395
        %v397 = vpop.f32.mrf.mxu0
        %v398 = vadd.f32 0.0, %v397
        %399 = vmatmul.bf16.gmra.mxu0 %v279
        %v400 = vpop.f32.mrf.mxu0
        %v401 = vadd.f32 0.0, %v400
        %v402 = vpop.f32.mrf.mxu0
        %v403 = vadd.f32 0.0, %v402
        %404 = vmatmul.bf16.gmra.mxu0 %v280
        %v405 = vpop.f32.mrf.mxu0
        %v406 = vadd.f32 0.0, %v405
        %v407 = vpop.f32.mrf.mxu0
        %v408 = vadd.f32 0.0, %v407
        %409 = vmatmul.bf16.gmra.mxu0 %v281
        %v410 = vpop.f32.mrf.mxu0
        %v411 = vadd.f32 0.0, %v410
        %v412 = vpop.f32.mrf.mxu0
        %v413 = vadd.f32 0.0, %v412
        %414 = vmatmul.bf16.gmra.mxu0 %v282
        %v415 = vpop.f32.mrf.mxu0
        %v416 = vadd.f32 0.0, %v415
        %v417 = vpop.f32.mrf.mxu0
        %v418 = vadd.f32 0.0, %v417
        %419 = vmatmul.bf16.gmra.mxu0 %v283
        %v420 = vpop.f32.mrf.mxu0
        %v421 = vadd.f32 0.0, %v420
        %v422 = vpop.f32.mrf.mxu0
        %v423 = vadd.f32 0.0, %v422
        %424 = vmatmul.bf16.gmra.mxu0 %v284
        %v425 = vpop.f32.mrf.mxu0
        %v426 = vadd.f32 0.0, %v425
        %v427 = vpop.f32.mrf.mxu0
        %v428 = vadd.f32 0.0, %v427
        %429 = vmatmul.bf16.gmra.mxu0 %v285
        %v430 = vpop.f32.mrf.mxu0
        %v431 = vadd.f32 0.0, %v430
        %v432 = vpop.f32.mrf.mxu0
        %v433 = vadd.f32 0.0, %v432
        %434 = vmatmul.bf16.gmra.mxu0 %v286
        %v435 = vpop.f32.mrf.mxu0
        %v436 = vadd.f32 0.0, %v435
        %v437 = vpop.f32.mrf.mxu0
        %v438 = vadd.f32 0.0, %v437
        %439 = vdwg.mxu0
        %440 = vst [vmem:[%s226] sm:$0xff] %v361
        %441 = vst [vmem:[%s226 + $0x8] sm:$0xff] %v363
        %442 = vst [vmem:[%s226 + $0x10] sm:$0xff] %v366
        %443 = vst [vmem:[%s226 + $0x18] sm:$0xff] %v368
        %444 = vst [vmem:[%s226 + $0x20] sm:$0xff] %v371
        %445 = vst [vmem:[%s226 + $0x28] sm:$0xff] %v373
        %446 = vst [vmem:[%s226 + $0x30] sm:$0xff] %v376
        %447 = vst [vmem:[%s226 + $0x38] sm:$0xff] %v378
        %448 = vst [vmem:[%s226 + $0x40] sm:$0xff] %v381
        %449 = vst [vmem:[%s226 + $0x48] sm:$0xff] %v383
        %450 = vst [vmem:[%s226 + $0x50] sm:$0xff] %v386
        %451 = vst [vmem:[%s226 + $0x58] sm:$0xff] %v388
        %452 = vst [vmem:[%s226 + $0x60] sm:$0xff] %v391
        %453 = vst [vmem:[%s226 + $0x68] sm:$0xff] %v393
        %454 = vst [vmem:[%s226 + $0x70] sm:$0xff] %v396
        %455 = vst [vmem:[%s226 + $0x78] sm:$0xff] %v398
        %456 = vst [vmem:[%s226 + $0x80] sm:$0xff] %v401
        %457 = vst [vmem:[%s226 + $0x88] sm:$0xff] %v403
        %458 = vst [vmem:[%s226 + $0x90] sm:$0xff] %v406
        %459 = vst [vmem:[%s226 + $0x98] sm:$0xff] %v408
        %460 = vst [vmem:[%s226 + $0xa0] sm:$0xff] %v411
        %461 = vst [vmem:[%s226 + $0xa8] sm:$0xff] %v413
        %462 = vst [vmem:[%s226 + $0xb0] sm:$0xff] %v416
        %463 = vst [vmem:[%s226 + $0xb8] sm:$0xff] %v418
        %464 = vst [vmem:[%s226 + $0xc0] sm:$0xff] %v421
        %465 = vst [vmem:[%s226 + $0xc8] sm:$0xff] %v423
        %466 = vst [vmem:[%s226 + $0xd0] sm:$0xff] %v426
        %467 = vst [vmem:[%s226 + $0xd8] sm:$0xff] %v428
        %468 = vst [vmem:[%s226 + $0xe0] sm:$0xff] %v431
        %469 = vst [vmem:[%s226 + $0xe8] sm:$0xff] %v433
        %470 = vst [vmem:[%s226 + $0xf0] sm:$0xff] %v436
        %471 = vst [vmem:[%s226 + $0xf8] sm:$0xff] %v438
        %v472 = vld [vmem:[#allocation8] sm:$0x1]
        %v473 = vadd.f32 %v361, %v363
        %v474 = vadd.f32 %v473, %v366
        %v475 = vadd.f32 %v474, %v368
        %v476 = vadd.f32 %v475, %v371
        %v477 = vadd.f32 %v476, %v373
        %v478 = vadd.f32 %v477, %v376
        %v479 = vadd.f32 %v478, %v378
        %v480 = vadd.f32 %v479, %v381
        %v481 = vadd.f32 %v480, %v383
        %v482 = vadd.f32 %v481, %v386
        %v483 = vadd.f32 %v482, %v388
        %v484 = vadd.f32 %v483, %v391
        %v485 = vadd.f32 %v484, %v393
        %v486 = vadd.f32 %v485, %v396
        %v487 = vadd.f32 %v486, %v398
        %v488 = vadd.f32 %v487, %v401
        %v489 = vadd.f32 %v488, %v403
        %v490 = vadd.f32 %v489, %v406
        %v491 = vadd.f32 %v490, %v408
        %v492 = vadd.f32 %v491, %v411
        %v493 = vadd.f32 %v492, %v413
        %v494 = vadd.f32 %v493, %v416
        %v495 = vadd.f32 %v494, %v418
        %v496 = vadd.f32 %v495, %v421
        %v497 = vadd.f32 %v496, %v423
        %v498 = vadd.f32 %v497, %v426
        %v499 = vadd.f32 %v498, %v428
        %v500 = vadd.f32 %v499, %v431
        %v501 = vadd.f32 %v500, %v433
        %v502 = vadd.f32 %v501, %v436
        %v503 = vadd.f32 %v502, %v438
        %v504 = vrot.slane %v503, 4
        %v505 = vadd.f32 %v503, %v504
        %v506 = vrot.slane %v505, 2
        %v507 = vadd.f32 %v505, %v506
        %v508 = vrot.slane %v507, 1
        %v509 = vadd.f32 %v507, %v508
        %v510 = vadd.f32 %v472, %v509
        %511 = vst [vmem:[#allocation8] sm:$0x1] %v510
        %v512 = vld [vmem:[#allocation10] sm:$0x1]
        %v513 = vmul.f32 %v361, %v361
        %v514 = vmul.f32 %v363, %v363
        %v515 = vmul.f32 %v366, %v366
        %v516 = vmul.f32 %v368, %v368
        %v517 = vmul.f32 %v371, %v371
        %v518 = vmul.f32 %v373, %v373
        %v519 = vmul.f32 %v376, %v376
        %v520 = vmul.f32 %v378, %v378
        %v521 = vmul.f32 %v381, %v381
        %v522 = vmul.f32 %v383, %v383
        %v523 = vmul.f32 %v386, %v386
        %v524 = vmul.f32 %v388, %v388
        %v525 = vmul.f32 %v391, %v391
        %v526 = vmul.f32 %v393, %v393
        %v527 = vmul.f32 %v396, %v396
        %v528 = vmul.f32 %v398, %v398
        %v529 = vmul.f32 %v401, %v401
        %v530 = vmul.f32 %v403, %v403
        %v531 = vmul.f32 %v406, %v406
        %v532 = vmul.f32 %v408, %v408
        %v533 = vmul.f32 %v411, %v411
        %v534 = vmul.f32 %v413, %v413
        %v535 = vmul.f32 %v416, %v416
        %v536 = vmul.f32 %v418, %v418
        %v537 = vmul.f32 %v421, %v421
        %v538 = vmul.f32 %v423, %v423
        %v539 = vmul.f32 %v426, %v426
        %v540 = vmul.f32 %v428, %v428
        %v541 = vmul.f32 %v431, %v431
        %v542 = vmul.f32 %v433, %v433
        %v543 = vmul.f32 %v436, %v436
        %v544 = vmul.f32 %v438, %v438
        %v545 = vadd.f32 %v513, %v514
        %v546 = vadd.f32 %v545, %v515
        %v547 = vadd.f32 %v546, %v516
        %v548 = vadd.f32 %v547, %v517
        %v549 = vadd.f32 %v548, %v518
        %v550 = vadd.f32 %v549, %v519
        %v551 = vadd.f32 %v550, %v520
        %v552 = vadd.f32 %v551, %v521
        %v553 = vadd.f32 %v552, %v522
        %v554 = vadd.f32 %v553, %v523
        %v555 = vadd.f32 %v554, %v524
        %v556 = vadd.f32 %v555, %v525
        %v557 = vadd.f32 %v556, %v526
        %v558 = vadd.f32 %v557, %v527
        %v559 = vadd.f32 %v558, %v528
        %v560 = vadd.f32 %v559, %v529
        %v561 = vadd.f32 %v560, %v530
        %v562 = vadd.f32 %v561, %v531
        %v563 = vadd.f32 %v562, %v532
        %v564 = vadd.f32 %v563, %v533
        %v565 = vadd.f32 %v564, %v534
        %v566 = vadd.f32 %v565, %v535
        %v567 = vadd.f32 %v566, %v536
        %v568 = vadd.f32 %v567, %v537
        %v569 = vadd.f32 %v568, %v538
        %v570 = vadd.f32 %v569, %v539
        %v571 = vadd.f32 %v570, %v540
        %v572 = vadd.f32 %v571, %v541
        %v573 = vadd.f32 %v572, %v542
        %v574 = vadd.f32 %v573, %v543
        %v575 = vadd.f32 %v574, %v544
        %v576 = vrot.slane %v575, 4
        %v577 = vadd.f32 %v575, %v576
        %v578 = vrot.slane %v577, 2
        %v579 = vadd.f32 %v577, %v578
        %v580 = vrot.slane %v579, 1
        %v581 = vadd.f32 %v579, %v580
        %v582 = vadd.f32 %v512, %v581
        %583 = vst [vmem:[#allocation10] sm:$0x1] %v582
        %s584 = sand.u32 %s79, 1
        %s585 = scalar_lea.sflag [#allocation4], %s584
        %s586 = sand.u32 %s79, 1
        %s587 = smul.addr %s586, 256
        %s588 = scalar_lea.vmem [#allocation7], %s587
        // Predicated region
        $region41: #{tpu_custom_call.1} parent=27 // pred_check
          %p589 = pneg %p89
        $region42: #{tpu_custom_call.1} parent=27 // pred_check_branch
          %591 = sbr.rel (%p589) target = $region44
        $region43: #{tpu_custom_call.1} parent=27 // pred_region
          %s592 = smul.u32 32, %s24
          %594 = vsyncadd %s585, 0
          %s595 = smul.addr %s592, 8
          %s596 = scalar_lea.hbm %s2, %s595
          %s597 = sshll.u32 %s588, 4
          %s598 = int_to_ptr.vmem [resolvable:$true] %s597
          %s599 = sshll.u32 %s596, 4
          %s600 = int_to_ptr.hbm [resolvable:$true] %s599
          %605 = dma.vmem_to_hbm [thread:$0]  %s598, 4096, %s600, %s585, 128, 128, 8
        $region44: #{tpu_custom_call.1} parent=27 // pred_fallthru
          _
        // Predicated region
        $region45: #{tpu_custom_call.1} parent=27 // pred_check
          %p606 = pneg %p110
        $region46: #{tpu_custom_call.1} parent=27 // pred_check_branch
          %608 = sbr.rel (%p606) target = $region48
        $region47: #{tpu_custom_call.1} parent=27 // pred_region
          %610 = vsyncadd [#allocation9], 0
          %s612 = sshll.u32 [#allocation8], 4
          %s613 = int_to_ptr.vmem [resolvable:$true] %s612
          %s614 = sshll.u32 %s3, 4
          %s615 = int_to_ptr.hbm [resolvable:$true] %s614
          %617 = dma.vmem_to_hbm [thread:$0]  %s613, 16, %s615, [#allocation9]
        $region48: #{tpu_custom_call.1} parent=27 // pred_fallthru
          _
        // Predicated region
        $region49: #{tpu_custom_call.1} parent=27 // pred_check
          %p618 = pneg %p131
        $region50: #{tpu_custom_call.1} parent=27 // pred_check_branch
          %620 = sbr.rel (%p618) target = $region52
        $region51: #{tpu_custom_call.1} parent=27 // pred_region
          %622 = vsyncadd [#allocation9], 0
          %s624 = sshll.u32 [#allocation10], 4
          %s625 = int_to_ptr.vmem [resolvable:$true] %s624
          %s626 = sshll.u32 %s4, 4
          %s627 = int_to_ptr.hbm [resolvable:$true] %s626
          %629 = dma.vmem_to_hbm [thread:$0]  %s625, 16, %s627, [#allocation9]
        $region52: #{tpu_custom_call.1} parent=27 // pred_fallthru
          _
        // Predicated region
        $region53: #{tpu_custom_call.1} parent=27 // pred_check
          %p630 = pneg %p110
        $region54: #{tpu_custom_call.1} parent=27 // pred_check_branch
          %632 = sbr.rel (%p630) target = $region56
        $region55: #{tpu_custom_call.1} parent=27 // pred_region
          %634 = dma.done [#allocation9], 16
        $region56: #{tpu_custom_call.1} parent=27 // pred_fallthru
          _
        // Predicated region
        $region57: #{tpu_custom_call.1} parent=27 // pred_check
          %p635 = pneg %p131
        $region58: #{tpu_custom_call.1} parent=27 // pred_check_branch
          %637 = sbr.rel (%p635) target = $region60
        $region59: #{tpu_custom_call.1} parent=27 // pred_region
          %639 = dma.done [#allocation9], 16
        $region60: #{tpu_custom_call.1} parent=27 // pred_fallthru
          _
      $region28: #{tpu_custom_call.1} parent=5 // pred_fallthru
        _
      %p640 = scmp.le.s32.totalorder 2, %s19
      // Predicated region
      $region61: #{tpu_custom_call.1} parent=5 // pred_check
        %p641 = pneg %p640
      $region62: #{tpu_custom_call.1} parent=5 // pred_check_branch
        %643 = sbr.rel (%p641) target = $region64
      $region63: #{tpu_custom_call.1} parent=5 // pred_region
        %s644 = ssub.s32 %s19, 2
        // Predicated region
        $region65: #{tpu_custom_call.1} parent=63 // pred_check
          %p645 = pneg %p95
        $region66: #{tpu_custom_call.1} parent=63 // pred_check_branch
          %647 = sbr.rel (%p645) target = $region68
        $region67: #{tpu_custom_call.1} parent=63 // pred_region
          %s648 = sand.u32 %s80, 1
          %s649 = scalar_lea.sflag [#allocation4], %s648
          %s650 = sand.u32 %s80, 1
          %s651 = smul.addr %s650, 256
          %s652 = scalar_lea.vmem [#allocation7], %s651
          %654 = dma.done %s649, 4096
        $region68: #{tpu_custom_call.1} parent=63 // pred_fallthru
          _
      $region64: #{tpu_custom_call.1} parent=5 // pred_fallthru
        _
    $region6: #{tpu_custom_call.1} parent=1 // loop_footer
      %s23 = sadd.s32 1, %s19
    $region7: #{tpu_custom_call.1} parent=1 // loop_footer_branch
      %18 = sbr.rel target = $region3
    $region8: #{tpu_custom_call.1} parent=1 // loop_exit
      _
    %655 = vsyncpa [#allocation3], 1
    %s656 = scalar_lea.sflag [#allocation3], 1
    %657 = vsyncpa %s656, 1
    %658 = vsyncpa [#allocation6], 1
    %659 = vsyncpa [#allocation4], 1
    %s660 = scalar_lea.sflag [#allocation4], 1
    %661 = vsyncpa %s660, 1
    %662 = vsyncpa [#allocation9], 1

</llo_original>
